<compile_context>
chip_gen: v7x
topology: tpu7x:2x2x1
jax: 0.10.0
libtpu: 0.0.40
codegen_flags: <defaults>
</compile_context>

<pallas_src>
import jax
import jax.numpy as jnp
from jax.experimental import pallas as pl
from jax.experimental.pallas import tpu as pltpu


def _round_up(x, m):
    return (x + m - 1) // m * m


def _cdiv(a, b):
    return -(-a // b)


_NEG = -1e30  # effectively -inf for padded logit columns (finite -> no inf-inf NaN)


# ----------------------- VMEM policy (generation aware) -----------------------
def _vmem_policy():
    """Return (scratch budget bytes, vmem_limit_bytes, small_vmem_chip)."""
    try:
        cap = int(pltpu.get_tpu_info().vmem_capacity_bytes)
    except Exception:
        cap = 128 * 1024 * 1024  # assume v5e/v6e-class if the query is unavailable
    if cap >= 100 * 1024 * 1024:            # v5e / v6e: 128 MiB physical VMEM
        return 64 * 1024 * 1024, 100 * 1024 * 1024, False
    # v7x-class: 64 MiB physical per TensorCore -> keep clear headroom
    return 28 * 1024 * 1024, 48 * 1024 * 1024, True


# ----------------------------- kernels ----------------------------------------
def _slp_resident_kernel(x_ref, wT_ref, b_ref, o_ref):
    # x_ref: (TB, K); wT_ref: (K, O_pad) pre-transposed; b_ref: (1, O_pad) f32.
    logits = jnp.dot(x_ref[...], wT_ref[...], preferred_element_type=jnp.float32)
    logits = logits + b_ref[...]                      # (TB, O_pad) + (1, O_pad)

    # Numerically-stable log-softmax.  Padded columns carry a -1e30 bias, so
    # they never win the max and contribute exp(~-inf)=0 to the denominator.
    m = jnp.max(logits, axis=-1, keepdims=True)
    shifted = logits - m
    lse = jnp.log(jnp.sum(jnp.exp(shifted), axis=-1, keepdims=True))
    o_ref[...] = (shifted - lse).astype(o_ref.dtype)


def _slp_otile_kernel(x_ref, wT_ref, b_ref, logits_ref, lse_ref, m_sc, l_sc):
    # O-tiled online log-softmax: emit raw logits per (i, j) tile and a per-row
    # LSE accumulated across the j (output-tile) axis.
    j = pl.program_id(1)

    @pl.when(j == 0)
    def _():
        m_sc[...] = jnp.full_like(m_sc, _NEG)
        l_sc[...] = jnp.zeros_like(l_sc)

    logits = jnp.dot(x_ref[...], wT_ref[...], preferred_element_type=jnp.float32)
    logits = logits + b_ref[...]
    logits_ref[...] = logits

    m_prev = m_sc[...]
    m_new = jnp.maximum(m_prev, jnp.max(logits, axis=-1, keepdims=True))
    l_sc[...] = (l_sc[...] * jnp.exp(m_prev - m_new)
                 + jnp.sum(jnp.exp(logits - m_new), axis=-1, keepdims=True))
    m_sc[...] = m_new

    @pl.when(j == pl.num_programs(1) - 1)
    def _():
        lse_ref[...] = m_sc[...] + jnp.log(l_sc[...])


# ----------------------------- wrappers ----------------------------------------
def _slp_resident(xin, wT, bp, B, D_in, D_out, O_pad, in_bytes,
                  budget, vmem_limit, small_vmem, x_buffers):
    # Largest batch tile fitting the budget: W/bias single-buffered (resident),
    # x `x_buffers`-deep, output double-buffered.
    w_res = D_in * O_pad * in_bytes + O_pad * 4
    TB, cand = 8, 8
    while cand <= 4096:
        need = w_res + x_buffers * cand * D_in * in_bytes + 2 * cand * O_pad * 4
        if need <= budget:
            TB = cand
        cand *= 2
    TB = min(TB, _round_up(B, 8))
    if small_vmem and B > 8:
        # 2-TensorCore chips: keep >= 2 grid steps so the "parallel" axis
        # actually shards work across both cores.
        TB = min(TB, max(8, _round_up(_cdiv(B, 2), 8)))
    B_pad = _round_up(B, TB)

    xp = xin if B_pad == B else jnp.pad(xin, ((0, B_pad - B), (0, 0)))

    cost = pl.CostEstimate(
        flops=2 * B_pad * D_in * O_pad,
        transcendentals=B_pad * O_pad,
        bytes_accessed=(B_pad * D_in * in_bytes + D_in * O_pad * in_bytes
                        + O_pad * 4 + B_pad * O_pad * 4),
    )

    x_kwargs = {} if x_buffers == 2 else {"pipeline_mode": pl.Buffered(x_buffers)}

    out = pl.pallas_call(
        _slp_resident_kernel,
        out_shape=jax.ShapeDtypeStruct((B_pad, O_pad), jnp.float32),
        grid_spec=pltpu.PrefetchScalarGridSpec(
            num_scalar_prefetch=0,
            grid=(B_pad // TB,),
            in_specs=[
                pl.BlockSpec((TB, D_in), lambda i: (i, 0), **x_kwargs),   # x tile
                pl.BlockSpec((D_in, O_pad), lambda i: (0, 0),
                             pipeline_mode=pl.Buffered(1)),               # W resident
                pl.BlockSpec((1, O_pad), lambda i: (0, 0),
                             pipeline_mode=pl.Buffered(1)),               # bias resident
            ],
            out_specs=pl.BlockSpec((TB, O_pad), lambda i: (i, 0)),
        ),
        compiler_params=pltpu.CompilerParams(
            dimension_semantics=("parallel",),
            vmem_limit_bytes=vmem_limit,
        ),
        cost_estimate=cost,
    )(xp, wT, bp)

    if B_pad == B and O_pad == D_out:
        return out                       # fast path: no pad was introduced
    return out[:B, :D_out]


def _slp_otiled(xin, wT, bp, B, D_in, D_out, O_pad, in_bytes, budget, vmem_limit):
    # Large-head fallback: W cannot stay VMEM-resident, tile the output dim.
    TB = min(256, _round_up(B, 8))

    def fits(tb, to):
        need = (2 * tb * D_in * in_bytes      # x (double-buffered)
                + 2 * D_in * to * in_bytes    # W tile
                + 2 * to * 4                  # bias tile
                + 2 * tb * to * 4             # logits out tile
                + 2 * tb * 4 + 2 * tb * 4)    # lse out + m/l scratch
        return need <= budget

    while TB > 8 and not fits(TB, 128):
        TB = max(8, TB // 2)
    TO = 128
    while TO * 2 <= O_pad and fits(TB, TO * 2):
        TO *= 2

    B_pad = _round_up(B, TB)
    O_pad2 = _round_up(O_pad, TO)

    xp = xin if B_pad == B else jnp.pad(xin, ((0, B_pad - B), (0, 0)))
    wTp = wT if O_pad2 == O_pad else jnp.pad(wT, ((0, 0), (0, O_pad2 - O_pad)))
    bpp = bp if O_pad2 == O_pad else jnp.pad(bp, ((0, 0), (0, O_pad2 - O_pad)),
                                             constant_values=_NEG)

    cost = pl.CostEstimate(
        flops=2 * B_pad * D_in * O_pad2,
        transcendentals=B_pad * O_pad2,
        bytes_accessed=(B_pad * D_in * in_bytes
                        + (B_pad // TB) * D_in * O_pad2 * in_bytes
                        + O_pad2 * 4 + B_pad * O_pad2 * 4 + B_pad * 4),
    )

    logits, lse = pl.pallas_call(
        _slp_otile_kernel,
        out_shape=(jax.ShapeDtypeStruct((B_pad, O_pad2), jnp.float32),
                   jax.ShapeDtypeStruct((B_pad, 1), jnp.float32)),
        grid_spec=pltpu.PrefetchScalarGridSpec(
            num_scalar_prefetch=0,
            grid=(B_pad // TB, O_pad2 // TO),
            in_specs=[
                pl.BlockSpec((TB, D_in), lambda i, j: (i, 0)),
                pl.BlockSpec((D_in, TO), lambda i, j: (0, j)),
                pl.BlockSpec((1, TO), lambda i, j: (0, j)),
            ],
            out_specs=[
                pl.BlockSpec((TB, TO), lambda i, j: (i, j)),
                pl.BlockSpec((TB, 1), lambda i, j: (i, 0)),
            ],
            scratch_shapes=[pltpu.VMEM((TB, 1), jnp.float32),
                            pltpu.VMEM((TB, 1), jnp.float32)],
        ),
        compiler_params=pltpu.CompilerParams(
            dimension_semantics=("parallel", "arbitrary"),
            vmem_limit_bytes=vmem_limit,
        ),
        cost_estimate=cost,
    )(xp, wTp, bpp)

    # Normalize (memory-bound broadcast subtract; only in the large-W regime).
    return logits[:B, :D_out] - lse[:B]


def slp_forward(x, weight, bias, *, use_bf16=False, x_buffers=2, force_otile=False):
    """SLP forward: log_softmax(x @ weight.T + bias, axis=-1).

    x:      (B, D_in) f32
    weight: (D_out, D_in) f32  (PyTorch nn.Linear layout)
    bias:   (D_out,)  f32
    """
    B, D_in = x.shape
    D_out = weight.shape[0]

    budget, vmem_limit, small_vmem = _vmem_policy()
    in_bytes = 2 if use_bf16 else 4
    O_pad = _round_up(max(D_out, 1), 128)

    # One-time parameter transform (constant-folded for static params):
    # W^T in (K, N) layout, lane-dense N padding; padded logit columns get a
    # -1e30 bias so they never touch the softmax max/denominator.
    wT = jnp.pad(weight.T.astype(jnp.float32), ((0, 0), (0, O_pad - D_out)))
    bp = jnp.pad(bias.reshape(1, D_out).astype(jnp.float32),
                 ((0, 0), (0, O_pad - D_out)), constant_values=_NEG)
    if use_bf16:
        wT = wT.astype(jnp.bfloat16)
        xin = x.astype(jnp.bfloat16)
    else:
        xin = x

    w_res_bytes = D_in * O_pad * in_bytes + O_pad * 4     # single-buffered W + bias
    min_need = w_res_bytes + x_buffers * 8 * D_in * in_bytes + 2 * 8 * O_pad * 4
    use_otile = force_otile or (w_res_bytes > 0.4 * budget) or (min_need > budget)

    if not use_otile:
        return _slp_resident(xin, wT, bp, B, D_in, D_out, O_pad, in_bytes,
                             budget, vmem_limit, small_vmem, x_buffers)
    return _slp_otiled(xin, wT, bp, B, D_in, D_out, O_pad, in_bytes,
                       budget, vmem_limit)


if __name__ == "__main__":
    key = jax.random.PRNGKey(0)
    k_x, k_w, k_b = jax.random.split(key, 3)

    # Small shapes consistent with SLP(input_size, output_size)
    batch, input_size, output_size = 8, 32, 16

    bound = 1.0 / (input_size ** 0.5)
    weight = jax.random.uniform(k_w, (output_size, input_size), jnp.float32,
                                minval=-bound, maxval=bound)
    bias = jax.random.uniform(k_b, (output_size,), jnp.float32,
                              minval=-bound, maxval=bound)
    x = jax.random.normal(k_x, (batch, input_size), jnp.float32)

    # Resident-W fast path.
    out = jax.block_until_ready(slp_forward(x, weight, bias))
    ref = jax.nn.log_softmax(x @ weight.T + bias, axis=-1)
    assert out.shape == (batch, output_size)
    assert jnp.allclose(out, ref, atol=1e-5, rtol=1e-5)

    # Also exercise the O-tiled (large-head) online-softmax fallback path.
    out2_size = 300
    w2 = jax.random.uniform(k_w, (out2_size, input_size), jnp.float32,
                            minval=-bound, maxval=bound)
    b2 = jax.random.uniform(k_b, (out2_size,), jnp.float32,
                            minval=-bound, maxval=bound)
    out2 = jax.block_until_ready(slp_forward(x, w2, b2, force_otile=True))
    ref2 = jax.nn.log_softmax(x @ w2.T + b2, axis=-1)
    assert out2.shape == (batch, out2_size)
    assert jnp.allclose(out2, ref2, atol=1e-5, rtol=1e-5)

    print("KERNEL_OK")
</pallas_src>

<mosaic_0001>
module attributes {stable_mosaic.version = 11 : i64} {
  func.func @_slp_resident_kernel(%arg0: i32, %arg1: memref<8x32xf32, #tpu.memory_space<vmem>>, %arg2: memref<32x128xf32, #tpu.memory_space<vmem>>, %arg3: memref<1x128xf32, #tpu.memory_space<vmem>>, %arg4: memref<8x128xf32, #tpu.memory_space<vmem>>) attributes {dimension_semantics = [#tpu.dimension_semantics<parallel>], iteration_bounds = array<i64: 1>, scalar_prefetch = 0 : i64, scratch_operands = 0 : i64, tpu.core_type = #tpu.core_type<tc>, window_params = [{transform_indices = @transform_0, window_bounds = array<i64: 8, 32>}, {pipeline_mode = #tpu.pipeline_mode<synchronous>, transform_indices = @transform_1, window_bounds = array<i64: 32, 128>}, {pipeline_mode = #tpu.pipeline_mode<synchronous>, transform_indices = @transform_2, window_bounds = array<i64: 1, 128>}, {transform_indices = @transform_3, window_bounds = array<i64: 8, 128>}]} {
    %c0 = arith.constant 0 : index
    %c0_0 = arith.constant 0 : index
    %0 = vector.load %arg1[%c0, %c0_0] : memref<8x32xf32, #tpu.memory_space<vmem>>, vector<8x32xf32>
    %c0_1 = arith.constant 0 : index
    %c0_2 = arith.constant 0 : index
    %1 = vector.load %arg2[%c0_1, %c0_2] : memref<32x128xf32, #tpu.memory_space<vmem>>, vector<32x128xf32>
    %cst = arith.constant dense<0.000000e+00> : vector<8x128xf32>
    %2 = tpu.matmul %0, %1, %cst {dimension_numbers = #tpu.dot_dimension_numbers<[1], [0], [0], [1], [0, 0, 1, 1], [], []>} : vector<8x32xf32>, vector<32x128xf32>, vector<8x128xf32> -> vector<8x128xf32>
    %c0_3 = arith.constant 0 : index
    %c0_4 = arith.constant 0 : index
    %3 = vector.load %arg3[%c0_3, %c0_4] : memref<1x128xf32, #tpu.memory_space<vmem>>, vector<1x128xf32>
    %4 = vector.broadcast %3 : vector<1x128xf32> to vector<8x128xf32>
    %5 = arith.addf %2, %4 : vector<8x128xf32>
    %cst_5 = arith.constant dense<0xFF800000> : vector<8xf32>
    %6 = vector.multi_reduction <maximumf>, %5, %cst_5 [1] : vector<8x128xf32> to vector<8xf32>
    %7 = vector.shape_cast %6 : vector<8xf32> to vector<8x1xf32>
    %8 = vector.broadcast %7 : vector<8x1xf32> to vector<8x128xf32>
    %9 = arith.subf %5, %8 : vector<8x128xf32>
    %10 = math.exp %9 : vector<8x128xf32>
    %cst_6 = arith.constant dense<0.000000e+00> : vector<8xf32>
    %11 = vector.multi_reduction <add>, %10, %cst_6 [1] : vector<8x128xf32> to vector<8xf32>
    %12 = vector.shape_cast %11 : vector<8xf32> to vector<8x1xf32>
    %13 = math.log %12 : vector<8x1xf32>
    %14 = vector.broadcast %13 : vector<8x1xf32> to vector<8x128xf32>
    %15 = arith.subf %9, %14 : vector<8x128xf32>
    %c0_7 = arith.constant 0 : index
    %c0_8 = arith.constant 0 : index
    %16 = vector.load %arg4[%c0_7, %c0_8] : memref<8x128xf32, #tpu.memory_space<vmem>>, vector<8x128xf32>
    tpu.vector_store %arg4[%c0_7, %c0_8], %15 {strides = array<i32>} : memref<8x128xf32, #tpu.memory_space<vmem>>, vector<8x128xf32>,
    return
  }
  func.func @transform_0(%arg0: i32) -> (i32, i32) {
    %c0_i32 = arith.constant 0 : i32
    %c0_i32_0 = arith.constant 0 : i32
    return %arg0, %c0_i32 : i32, i32
  }
  func.func @transform_1(%arg0: i32) -> (i32, i32) {
    %c0_i32 = arith.constant 0 : i32
    %c0_i32_0 = arith.constant 0 : i32
    %c0_i32_1 = arith.constant 0 : i32
    return %c0_i32, %c0_i32_0 : i32, i32
  }
  func.func @transform_2(%arg0: i32) -> (i32, i32) {
    %c0_i32 = arith.constant 0 : i32
    %c0_i32_0 = arith.constant 0 : i32
    %c0_i32_1 = arith.constant 0 : i32
    return %c0_i32, %c0_i32_0 : i32, i32
  }
  func.func @transform_3(%arg0: i32) -> (i32, i32) {
    %c0_i32 = arith.constant 0 : i32
    %c0_i32_0 = arith.constant 0 : i32
    return %arg0, %c0_i32 : i32, i32
  }
}

</mosaic_0001>

<llo_original>
// kernel: tpu_custom_call.1
$region0: #{tpu_custom_call.1}
  #allocation0 [shape = 'u32[]', space=smem, size = 0x4, offset = 0x4, fixed_abs, tag = 'smem constant byte address 0x4 - core index']
  #allocation1 [shape = 'u32[144,128]{1,0:T(1,128)}', space=vmem, size = 0x12000, scoped, tag = 'internal scratch']
  %s0 = inlined_call_operand.hbm [shape: f32[8,32], index: 0, kind: input, shape index: {}]
  %s1 = inlined_call_operand.hbm [shape: f32[32,128], index: 1, kind: input, shape index: {}]
  %s2 = inlined_call_operand.hbm [shape: f32[1,128], index: 2, kind: input, shape index: {}]
  %s3 = inlined_call_operand.hbm [shape: f32[8,128], index: 3, kind: output, shape index: {}]
  %s4 = sld [smem:[#allocation0]]
  $region34: #{tpu_custom_call.1} parent=0
    _
  %s6 = ssub.s32 1, %s4
  %s7 = scalar_select 0, %s6, %s4
  $region1: #{tpu_custom_call.1} parent=0
    #allocation2 [shape = 'u8[4096]{0}', space=vmem, size = 0x1000, scoped, tag = 'input window, operand 0, single buffered']
    #allocation3 [shape = 's32[1]{0}', space=sflag, size = 0x4, scoped, tag = 'scoped memory for tpu_custom_call.1']
    #allocation4 [shape = 's32[1]{0}', space=sflag, size = 0x4, scoped, tag = 'scoped memory for tpu_custom_call.1']
    #allocation5 [shape = 'u8[16384]{0}', space=vmem, size = 0x4000, scoped, tag = 'input window, operand 1, single buffered']
    #allocation6 [shape = 's32[1]{0}', space=sflag, size = 0x4, scoped, tag = 'scoped memory for tpu_custom_call.1']
    #allocation7 [shape = 'u8[512]{0}', space=vmem, size = 0x400, scoped, tag = 'input window, operand 2, single buffered']
    #allocation8 [shape = 'u8[4096]{0}', space=vmem, size = 0x1000, scoped, tag = 'output window, operand 0, single buffered']
    %8 = vsyncpa [#allocation3], 0
    %9 = vsyncpa [#allocation6], 0
    %10 = vsyncpa [#allocation4], 0
    // Predicated region
    $region2: #{tpu_custom_call.1} parent=1 // pred_check
      _
    $region3: #{tpu_custom_call.1} parent=1 // pred_check_branch
      %12 = sbr.rel (0) target = $region5
    $region4: #{tpu_custom_call.1} parent=1 // pred_region
      %s14 = ssub.s32 128, 128
      %15 = vsyncadd [#allocation3], %s14
      %s17 = sshll.u32 [#allocation2], 4
      %s18 = int_to_ptr.vmem [resolvable:$true] %s17
      %20 = dma.hbm_to_vmem [thread:$0]  %s0, 128, %s18, [#allocation3]
    $region5: #{tpu_custom_call.1} parent=1 // pred_fallthru
      _
    // Predicated region
    $region6: #{tpu_custom_call.1} parent=1 // pred_check
      _
    $region7: #{tpu_custom_call.1} parent=1 // pred_check_branch
      %22 = sbr.rel (0) target = $region9
    $region8: #{tpu_custom_call.1} parent=1 // pred_region
      %s24 = ssub.s32 512, 512
      %25 = vsyncadd [#allocation6], %s24
      %s26 = sshll.u32 [#allocation5], 4
      %s27 = int_to_ptr.vmem [resolvable:$true] %s26
      %32 = dma.hbm_to_vmem [thread:$0]  %s1, 512, %s27, [#allocation6], 128, 128, 8
    $region9: #{tpu_custom_call.1} parent=1 // pred_fallthru
      _
    // Predicated region
    $region10: #{tpu_custom_call.1} parent=1 // pred_check
      _
    $region11: #{tpu_custom_call.1} parent=1 // pred_check_branch
      %34 = sbr.rel (0) target = $region13
    $region12: #{tpu_custom_call.1} parent=1 // pred_region
      %s36 = ssub.s32 16, 16
      %37 = vsyncadd [#allocation6], %s36
      %s39 = sshll.u32 [#allocation7], 4
      %s40 = int_to_ptr.vmem [resolvable:$true] %s39
      %42 = dma.hbm_to_vmem [thread:$0]  %s2, 16, %s40, [#allocation6]
    $region13: #{tpu_custom_call.1} parent=1 // pred_fallthru
      _
    // Predicated region
    $region14: #{tpu_custom_call.1} parent=1 // pred_check
      _
    $region15: #{tpu_custom_call.1} parent=1 // pred_check_branch
      %44 = sbr.rel (0) target = $region17
    $region16: #{tpu_custom_call.1} parent=1 // pred_region
      %45 = dma.done [#allocation3], 128
    $region17: #{tpu_custom_call.1} parent=1 // pred_fallthru
      _
    // Predicated region
    $region18: #{tpu_custom_call.1} parent=1 // pred_check
      _
    $region19: #{tpu_custom_call.1} parent=1 // pred_check_branch
      %47 = sbr.rel (0) target = $region21
    $region20: #{tpu_custom_call.1} parent=1 // pred_region
      %48 = dma.done [#allocation6], 512
    $region21: #{tpu_custom_call.1} parent=1 // pred_fallthru
      _
    // Predicated region
    $region22: #{tpu_custom_call.1} parent=1 // pred_check
      _
    $region23: #{tpu_custom_call.1} parent=1 // pred_check_branch
      %50 = sbr.rel (0) target = $region25
    $region24: #{tpu_custom_call.1} parent=1 // pred_region
      %51 = dma.done [#allocation6], 16
    $region25: #{tpu_custom_call.1} parent=1 // pred_fallthru
      _
    %v52 = vld [vmem:[#allocation2] sm:$0xff]
    %v53 = vld [vmem:[#allocation5] sm:$0xff]
    %v54 = vld [vmem:[#allocation5 + $0x8] sm:$0xff]
    %v55 = vld [vmem:[#allocation5 + $0x10] sm:$0xff]
    %v56 = vld [vmem:[#allocation5 + $0x18] sm:$0xff]
    %v57 = vld [vmem:[#allocation7] sm:$0x1]
    %v59 = vlaneseq
    %v60 = vshrl.u32 %v59, 7
    %v61 = vsub.s32 0, %v60
    %v62 = vrot.slane %v57, %v61
    %vm64 = vcmask 261120
    %v66 = vsel %vm64, %v52, 0
    %68 = vmatprep.subr.mxu0 0.0
    %69 = vmatpush1.msra.mxu0 %v53
    %70 = vmatprep.subr.mxu0 0.0
    %71 = vmatpush1.msra.mxu0 %v54
    %72 = vmatprep.subr.mxu0 0.0
    %73 = vmatpush1.msra.mxu0 %v55
    %74 = vmatprep.subr.mxu0 0.0
    %75 = vmatpush1.msra.mxu0 %v56
    %76 = vmatprep.subr.mxu0 0.0
    %77 = vmatpush1.msra.mxu0 0.0
    %78 = vmatprep.subr.mxu0 0.0
    %79 = vmatpush1.msra.mxu0 0.0
    %80 = vmatprep.subr.mxu0 0.0
    %81 = vmatpush1.msra.mxu0 0.0
    %82 = vmatprep.subr.mxu0 0.0
    %83 = vmatpush1.msra.mxu0 0.0
    %84 = vmatprep.subr.mxu0 0.0
    %85 = vmatpush1.msra.mxu0 0.0
    %86 = vmatprep.subr.mxu0 0.0
    %87 = vmatpush1.msra.mxu0 0.0
    %88 = vmatprep.subr.mxu0 0.0
    %89 = vmatpush1.msra.mxu0 0.0
    %90 = vmatprep.subr.mxu0 0.0
    %91 = vmatpush1.msra.mxu0 0.0
    %92 = vmatprep.subr.mxu0 0.0
    %93 = vmatpush1.msra.mxu0 0.0
    %94 = vmatprep.subr.mxu0 0.0
    %95 = vmatpush1.msra.mxu0 0.0
    %96 = vmatprep.subr.mxu0 0.0
    %97 = vmatpush1.msra.mxu0 0.0
    %98 = vmatprep.subr.mxu0 0.0
    %99 = vmatpush1.msra.mxu0 0.0
    %100 = vmatprep.subr.mxu0 0.0
    %101 = vmatpush1.msra.mxu0 0.0
    %102 = vmatprep.subr.mxu0 0.0
    %103 = vmatpush1.msra.mxu0 0.0
    %104 = vmatprep.subr.mxu0 0.0
    %105 = vmatpush1.msra.mxu0 0.0
    %106 = vmatprep.subr.mxu0 0.0
    %107 = vmatpush1.msra.mxu0 0.0
    %108 = vmatprep.subr.mxu0 0.0
    %109 = vmatpush1.msra.mxu0 0.0
    %110 = vmatprep.subr.mxu0 0.0
    %111 = vmatpush1.msra.mxu0 0.0
    %112 = vmatprep.subr.mxu0 0.0
    %113 = vmatpush1.msra.mxu0 0.0
    %114 = vmatprep.subr.mxu0 0.0
    %115 = vmatpush1.msra.mxu0 0.0
    %116 = vmatprep.subr.mxu0 0.0
    %117 = vmatpush1.msra.mxu0 0.0
    %118 = vmatprep.subr.mxu0 0.0
    %119 = vmatpush1.msra.mxu0 0.0
    %120 = vmatprep.subr.mxu0 0.0
    %121 = vmatpush1.msra.mxu0 0.0
    %122 = vmatprep.subr.mxu0 0.0
    %123 = vmatpush1.msra.mxu0 0.0
    %124 = vmatprep.subr.mxu0 0.0
    %125 = vmatpush1.msra.mxu0 0.0
    %126 = vmatprep.subr.mxu0 0.0
    %127 = vmatpush1.msra.mxu0 0.0
    %128 = vmatprep.subr.mxu0 0.0
    %129 = vmatpush1.msra.mxu0 0.0
    %130 = vmatprep.subr.mxu0 0.0
    %131 = vmatpush1.msra.mxu0 0.0
    %132 = vmatprep.mubr.f32.mxu0 0.0
    %133 = vmatmul.mubr.f32.gmra.mrb[0].mxu0 %v66
    %v134 = vpop.f32.mrb[0].mxu0
    %v135 = vadd.f32 %v62, %v134
    %v136 = vpop.f32.mrb[0].mxu0
    %137 = vdwg.mxu0
    %138 = vmax.xlane.f32.xlu0 %v135
    %v139 = vpop.xlane.xlu0 %138
    %v140 = vsub.f32 %v135, %v139
    %v141 = vmul.f32 %v140, 1.442695
    %v142 = vpow.pop %v141
    %143 = vadd.xlane.f32.xlu0 %v142
    %v144 = vpop.xlane.xlu0 %143
    %v145 = vlog2.pop %v144
    %v146 = vmul.f32 %v145, 0.6931472
    %v147 = vsub.f32 %v140, %v146
    %148 = vst [vmem:[#allocation8] sm:$0xff] %v147
    // Predicated region
    $region26: #{tpu_custom_call.1} parent=1 // pred_check
      _
    $region27: #{tpu_custom_call.1} parent=1 // pred_check_branch
      %150 = sbr.rel (0) target = $region29
    $region28: #{tpu_custom_call.1} parent=1 // pred_region
      %s152 = ssub.s32 128, 128
      %153 = vsyncadd [#allocation4], %s152
      %s155 = sshll.u32 [#allocation8], 4
      %s156 = int_to_ptr.vmem [resolvable:$true] %s155
      %158 = dma.vmem_to_hbm [thread:$0]  %s156, 128, %s3, [#allocation4]
    $region29: #{tpu_custom_call.1} parent=1 // pred_fallthru
      _
    // Predicated region
    $region30: #{tpu_custom_call.1} parent=1 // pred_check
      _
    $region31: #{tpu_custom_call.1} parent=1 // pred_check_branch
      %160 = sbr.rel (0) target = $region33
    $region32: #{tpu_custom_call.1} parent=1 // pred_region
      %161 = dma.done [#allocation4], 128
    $region33: #{tpu_custom_call.1} parent=1 // pred_fallthru
      _
    %162 = vsyncpa [#allocation3], 1
    %163 = vsyncpa [#allocation6], 1
    %164 = vsyncpa [#allocation4], 1

</llo_original>
